<compile_context>
chip_gen: v7x
topology: tpu7x:2x2x1
jax: 0.10.0
libtpu: 0.0.40
codegen_flags: <defaults>
</compile_context>

<pallas_src>
import functools

import jax
import jax.numpy as jnp
import numpy as np
from jax.experimental import pallas as pl
from jax.experimental.pallas import tpu as pltpu

_LOG2E = 1.4426950408889634


# ---------------------------------------------------------------------------
# Helpers
# ---------------------------------------------------------------------------
def _weight_spec(block_shape, index_map):
    """BlockSpec for a grid-invariant (weight/bias) block: single-buffered when the
    running jax supports pipeline_mode (no re-DMA happens anyway, this just halves
    the block's VMEM residency, which matters on v7x's 64 MiB VMEM)."""
    if hasattr(pl, "Buffered"):
        try:
            return pl.BlockSpec(block_shape, index_map, pipeline_mode=pl.Buffered(1))
        except TypeError:
            pass
    return pl.BlockSpec(block_shape, index_map)


def _tpu_info():
    vmem_cap = 64 << 20                      # conservative default (v7x per-TC VMEM)
    try:
        vmem_cap = int(pltpu.get_tpu_info().vmem_capacity_bytes)
    except Exception:
        pass
    kind = ""
    try:
        kind = jax.devices()[0].device_kind.lower()
    except Exception:
        pass
    return kind, vmem_cap


def _pick_tile(n, desired):
    """Largest divisor of n that is <= desired and sublane-friendly (multiple of 8),
    falling back to the full extent (always legal for a BlockSpec)."""
    desired = max(8, min(desired, n))
    for t in range(desired, 0, -1):
        if n % t == 0 and (t % 8 == 0 or t == n):
            return t
    return n


def _vmem_limit(need_bytes, vmem_cap):
    ceiling = max(vmem_cap - (8 << 20), 16 << 20)   # leave headroom below physical VMEM
    return int(min(max(need_bytes + (4 << 20), 32 << 20), ceiling))


# ---------------------------------------------------------------------------
# Kernel 1: nested_linear_expand -> qkv, emitted as three lane-dense token-major
#           (B, N, C) bf16 arrays (q columns pre-scaled by scale*log2(e)).
# ---------------------------------------------------------------------------
def _nested_qkv_kernel(x_ref, dims_ref, wqkv_ref, q_ref, k_ref, v_ref):
    x = x_ref[0]                       # (tq, C)
    d = dims_ref[0]                    # (tq, 1) int32 active-channel count
    tq, C = x.shape

    # nested_linear_expand input mask, applied in bf16 (packed vregs on v6e/v7x).
    col = jax.lax.broadcasted_iota(jnp.int32, (tq, C), 1)
    xb = x.astype(jnp.bfloat16)
    xm = jnp.where(col < d, xb, jnp.zeros_like(xb))

    # Full (C -> 3C) projection on the MXU; scale*log2(e) is pre-folded into the q
    # columns of W_qkv^T, accumulation stays f32.
    qkv = jnp.dot(xm, wqkv_ref[...], preferred_element_type=jnp.float32)   # (tq, 3C)
    qkv = qkv.astype(jnp.bfloat16)

    # Lane-dense token-major outputs (no per-head narrow stores): for production C
    # (a multiple of 128) these are unmasked full-vreg stores.
    q_ref[0] = qkv[:, :C]
    k_ref[0] = qkv[:, C:2 * C]
    v_ref[0] = qkv[:, 2 * C:]


# ---------------------------------------------------------------------------
# Kernel 2: head-batched flash attention (base-2 online softmax over KV tiles)
#           fused with nested_linear_contract (head-major proj + bias + mask).
# ---------------------------------------------------------------------------
def _flash_attn_proj_kernel(dims_ref, q_ref, k_ref, v_ref, wproj_ref, bproj_ref,
                            o_ref, q_hm, m_sc, l_sc, acc_sc, *, num_heads):
    ki = pl.program_id(2)
    H = num_heads
    hd = q_hm.shape[-1]

    @pl.when(ki == 0)
    def _init():
        # One-time head split of the query tile into VMEM scratch (per (b, qi)).
        q = q_ref[0]                                       # (tq, C) bf16, pre-scaled
        for h in range(H):
            q_hm[h] = q[:, h * hd:(h + 1) * hd]
        m_sc[...] = jnp.full(m_sc.shape, -jnp.inf, m_sc.dtype)
        l_sc[...] = jnp.zeros(l_sc.shape, l_sc.dtype)
        acc_sc[...] = jnp.zeros(acc_sc.shape, acc_sc.dtype)

    k = k_ref[0]                                           # (tk, C) bf16
    v = v_ref[0]
    # Head split of the KV tile: lane slices + leading-axis stack (XLU work that
    # overlaps the MXU); no HBM-side narrow stores anywhere.
    k_hm = jnp.stack([k[:, h * hd:(h + 1) * hd] for h in range(H)], axis=0)   # (H, tk, hd)
    v_hm = jnp.stack([v[:, h * hd:(h + 1) * hd] for h in range(H)], axis=0)

    # Head-batched scores; q already carries scale*log2(e), so the online softmax
    # runs in the base-2 domain (exp2, no per-element log2(e) multiply).
    s = jax.lax.dot_general(q_hm[...], k_hm, (((2,), (2,)), ((0,), (0,))),
                            preferred_element_type=jnp.float32)               # (H, tq, tk)
    m_prev = m_sc[...]
    m_new = jnp.maximum(m_prev, jnp.max(s, axis=-1, keepdims=True))
    alpha = jnp.exp2(m_prev - m_new)
    p = jnp.exp2(s - m_new)
    l_sc[...] = alpha * l_sc[...] + jnp.sum(p, axis=-1, keepdims=True)
    pv = jax.lax.dot_general(p.astype(jnp.bfloat16), v_hm,
                             (((2,), (1,)), ((0,), (0,))),
                             preferred_element_type=jnp.float32)              # (H, tq, hd)
    acc_sc[...] = alpha * acc_sc[...] + pv
    m_sc[...] = m_new

    @pl.when(ki == pl.num_programs(2) - 1)
    def _finalize():
        tq = acc_sc.shape[1]
        C = H * hd
        inv_l = pl.reciprocal(l_sc[...], approx=False)        # EUP, once per query tile
        o = (acc_sc[...] * inv_l).astype(jnp.bfloat16)        # (H, tq, hd)
        # Head-major contraction against W_proj^T reshaped to (H, hd, C): H MXU dots
        # accumulated in f32 -- no lane concat of the heads.
        y = jnp.dot(o[0], wproj_ref[0], preferred_element_type=jnp.float32)
        for h in range(1, H):
            y = y + jnp.dot(o[h], wproj_ref[h], preferred_element_type=jnp.float32)
        y = y + bproj_ref[...]
        # nested_linear_contract output-channel mask.
        col = jax.lax.broadcasted_iota(jnp.int32, (tq, C), 1)
        y = jnp.where(col < dims_ref[0], y, jnp.zeros_like(y))
        o_ref[0] = y.astype(o_ref.dtype)


# ---------------------------------------------------------------------------
# Wrapper
# ---------------------------------------------------------------------------
def nested_experts_attention(x, expert_mask, w_qkv, w_proj, b_proj, *,
                             num_heads, num_experts,
                             q_tile=None, kv_tile=None, proj_tile=None):
    B, N, C = x.shape
    assert C % num_heads == 0, "dim must be divisible by num_heads"
    hd = C // num_heads
    scale = hd ** -0.5
    itemsize = jnp.dtype(x.dtype).itemsize

    kind, vmem_cap = _tpu_info()
    is_v5e = ("v5e" in kind) or ("v5 lite" in kind) or ("v5lite" in kind)
    is_v6 = "v6" in kind
    if is_v5e:                                   # 4x128^2 MXU, 1 vst slot, no bf16 VALU
        d_p, d_q, d_k = 128, 128, 128
    elif is_v6 and vmem_cap >= (100 << 20):      # 128 MiB VMEM: push toward HBM roofline
        d_p, d_q, d_k = 512, 256, 256
    else:                                        # v7x (64 MiB VMEM) / default
        d_p, d_q, d_k = 256, 256, 256

    tp = _pick_tile(N, proj_tile if proj_tile is not None else d_p)   # kernel-1 token tile
    tq = _pick_tile(N, q_tile if q_tile is not None else d_q)         # kernel-2 query tile
    tk = _pick_tile(N, kv_tile if kv_tile is not None else d_k)       # kernel-2 kv tile

    # expert e -> first C // 2**(num_experts-1-e) channels are active.
    em = expert_mask.astype(jnp.int32)
    dims = (C // (2 ** (num_experts - 1 - em))).astype(jnp.int32)[..., None]   # (B, N, 1)

    # nn.Linear stores (out_features, in_features): transpose, fold scale*log2(e)
    # into the q output columns (base-2 softmax), cast weights to bf16 for the MXU.
    wqkv_t = jnp.asarray(w_qkv, jnp.float32).T                                 # (C, 3C)
    wqkv_t = wqkv_t.at[:, :C].multiply(scale * _LOG2E).astype(jnp.bfloat16)
    # Head-major W_proj^T: block h holds the weight rows for head h's channels.
    wproj_hm = jnp.asarray(w_proj, jnp.float32).T.reshape(num_heads, hd, C)
    wproj_hm = wproj_hm.astype(jnp.bfloat16)                                   # (H, hd, C)
    bproj = jnp.asarray(b_proj, jnp.float32).reshape(1, C)

    # ---------------- kernel 1: nested qkv projection ----------------
    need1 = (2 * tp * C * itemsize                 # x blocks (double-buffered)
             + 2 * tp * 128 * 4                    # dims blocks (lane-padded)
             + C * 3 * C * 2                       # W_qkv^T bf16 (single-buffered)
             + 2 * 3 * tp * C * 2                  # q/k/v output blocks
             + tp * 3 * C * 8)                     # matmul temporaries
    q, k, v = pl.pallas_call(
        _nested_qkv_kernel,
        out_shape=(
            jax.ShapeDtypeStruct((B, N, C), jnp.bfloat16),
            jax.ShapeDtypeStruct((B, N, C), jnp.bfloat16),
            jax.ShapeDtypeStruct((B, N, C), jnp.bfloat16),
        ),
        grid=(B, N // tp),
        in_specs=[
            pl.BlockSpec((1, tp, C), lambda b, i: (b, i, 0)),          # x
            pl.BlockSpec((1, tp, 1), lambda b, i: (b, i, 0)),          # per-token dims
            _weight_spec((C, 3 * C), lambda b, i: (0, 0)),             # W_qkv^T (q pre-scaled)
        ],
        out_specs=(
            pl.BlockSpec((1, tp, C), lambda b, i: (b, i, 0)),
            pl.BlockSpec((1, tp, C), lambda b, i: (b, i, 0)),
            pl.BlockSpec((1, tp, C), lambda b, i: (b, i, 0)),
        ),
        compiler_params=pltpu.CompilerParams(
            dimension_semantics=("parallel", "parallel"),
            vmem_limit_bytes=_vmem_limit(need1, vmem_cap),
        ),
    )(x, dims, wqkv_t)

    # ------------- kernel 2: flash attention + nested contract -------------
    need2 = (2 * tq * C * 2 + 4 * tk * C * 2       # q / k / v input blocks
             + 2 * tq * 128 * 4                    # dims blocks
             + C * C * 2 + 128 * 4                 # W_proj^T, bias (single-buffered)
             + 2 * tq * C * itemsize               # output blocks
             + tq * C * 2 + tq * C * 4             # q_hm / acc scratch
             + 2 * num_heads * tq * 128 * 4        # m / l scratch (lane-padded)
             + 2 * tk * C * 2                      # k_hm / v_hm temporaries
             + num_heads * tq * tk * 10            # s, p (f32) + p (bf16)
             + 2 * tq * C * 4)                     # pv / projection temporaries
    # On v7x, sharding the megacore split over the batch (not qi) avoids re-streaming
    # every K/V tile on both TensorCores; harmless on single-TC v5e/v6e.
    if B % 2 == 0:
        sem2 = ("parallel", "arbitrary", "arbitrary")
    else:
        sem2 = ("parallel", "parallel", "arbitrary")
    attn_kernel = functools.partial(_flash_attn_proj_kernel, num_heads=num_heads)
    out = pl.pallas_call(
        attn_kernel,
        out_shape=jax.ShapeDtypeStruct((B, N, C), x.dtype),
        grid=(B, N // tq, N // tk),
        in_specs=[
            pl.BlockSpec((1, tq, 1), lambda b, qi, ki: (b, qi, 0)),    # dims
            pl.BlockSpec((1, tq, C), lambda b, qi, ki: (b, qi, 0)),    # q (token-major)
            pl.BlockSpec((1, tk, C), lambda b, qi, ki: (b, ki, 0)),    # k
            pl.BlockSpec((1, tk, C), lambda b, qi, ki: (b, ki, 0)),    # v
            _weight_spec((num_heads, hd, C), lambda b, qi, ki: (0, 0, 0)),   # W_proj^T head-major
            _weight_spec((1, C), lambda b, qi, ki: (0, 0)),            # b_proj
        ],
        out_specs=pl.BlockSpec((1, tq, C), lambda b, qi, ki: (b, qi, 0)),
        scratch_shapes=[
            pltpu.VMEM((num_heads, tq, hd), jnp.bfloat16),   # head-major q tile
            pltpu.VMEM((num_heads, tq, 1), jnp.float32),     # running max (log2 domain)
            pltpu.VMEM((num_heads, tq, 1), jnp.float32),     # running sum
            pltpu.VMEM((num_heads, tq, hd), jnp.float32),    # output accumulator
        ],
        compiler_params=pltpu.CompilerParams(
            dimension_semantics=sem2,
            vmem_limit_bytes=_vmem_limit(need2, vmem_cap),
        ),
    )(dims, q, k, v, wproj_hm, bproj)
    return out


# ---------------------------------------------------------------------------
# Pure-JAX f32 reference matching the PyTorch forward (eval mode).
# ---------------------------------------------------------------------------
def _reference(x, expert_mask, w_qkv, w_proj, b_proj, *, num_heads, num_experts):
    B, N, C = x.shape
    hd = C // num_heads
    scale = hd ** -0.5
    dims = C // (2 ** (num_experts - 1 - expert_mask))            # (B, N)
    in_mask = jnp.arange(C)[None, None, :] < dims[..., None]      # (B, N, C)
    xm = jnp.where(in_mask, x, 0.0)
    qkv = xm @ w_qkv.T                                            # (B, N, 3C)
    qkv = qkv.reshape(B, N, 3, num_heads, hd).transpose(2, 0, 3, 1, 4)
    q, k, v = qkv[0], qkv[1], qkv[2]                              # (B, H, N, hd)
    s = jnp.einsum('bhnd,bhmd->bhnm', q, k) * scale
    p = jax.nn.softmax(s, axis=-1)
    o = jnp.einsum('bhnm,bhmd->bhnd', p, v)
    o = o.transpose(0, 2, 1, 3).reshape(B, N, C)
    y = o @ w_proj.T + b_proj
    return jnp.where(in_mask, y, 0.0)


if __name__ == "__main__":
    B, N, C = 2, 8, 32
    num_heads, num_experts = 4, 4

    key = jax.random.PRNGKey(0)
    kx, km, k1, k2, k3 = jax.random.split(key, 5)

    x = jax.random.normal(kx, (B, N, C), jnp.float32)
    expert_mask = jax.random.randint(km, (B, N), 0, num_experts, jnp.int32)

    # deterministic synthetic parameters (nn.Linear shapes: (out_features, in_features))
    w_qkv = jax.random.normal(k1, (3 * C, C), jnp.float32) * (C ** -0.5)   # qkv_bias=False
    w_proj = jax.random.normal(k2, (C, C), jnp.float32) * (C ** -0.5)
    b_proj = jax.random.normal(k3, (C,), jnp.float32) * 0.02

    out = nested_experts_attention(x, expert_mask, w_qkv, w_proj, b_proj,
                                   num_heads=num_heads, num_experts=num_experts)
    out = jax.block_until_ready(out)

    ref = _reference(x, expert_mask, w_qkv, w_proj, b_proj,
                     num_heads=num_heads, num_experts=num_experts)
    # bf16 MXU operands between the two kernels -> looser tolerance than pure-f32.
    np.testing.assert_allclose(np.asarray(out), np.asarray(ref), rtol=5e-2, atol=5e-2)

    print("KERNEL_OK")
</pallas_src>

<mosaic_0001>
module attributes {stable_mosaic.version = 11 : i64} {
  func.func @_nested_qkv_kernel(%arg0: i32, %arg1: i32, %arg2: memref<1x8x32xf32, #tpu.memory_space<vmem>>, %arg3: memref<1x8x1xi32, #tpu.memory_space<vmem>>, %arg4: memref<32x96xbf16, #tpu.memory_space<vmem>>, %arg5: memref<1x8x32xbf16, #tpu.memory_space<vmem>>, %arg6: memref<1x8x32xbf16, #tpu.memory_space<vmem>>, %arg7: memref<1x8x32xbf16, #tpu.memory_space<vmem>>) attributes {dimension_semantics = [#tpu.dimension_semantics<parallel>, #tpu.dimension_semantics<parallel>], iteration_bounds = array<i64: 2, 1>, scalar_prefetch = 0 : i64, scratch_operands = 0 : i64, tpu.core_type = #tpu.core_type<tc>, window_params = [{transform_indices = @transform_0, window_bounds = array<i64: 1, 8, 32>}, {transform_indices = @transform_1, window_bounds = array<i64: 1, 8, 1>}, {pipeline_mode = #tpu.pipeline_mode<synchronous>, transform_indices = @transform_2, window_bounds = array<i64: 32, 96>}, {transform_indices = @transform_3, window_bounds = array<i64: 1, 8, 32>}, {transform_indices = @transform_4, window_bounds = array<i64: 1, 8, 32>}, {transform_indices = @transform_5, window_bounds = array<i64: 1, 8, 32>}]} {
    %c0 = arith.constant 0 : index
    %c0_0 = arith.constant 0 : index
    %c0_1 = arith.constant 0 : index
    %0 = vector.load %arg2[%c0, %c0_0, %c0_1] : memref<1x8x32xf32, #tpu.memory_space<vmem>>, vector<1x8x32xf32>
    %1 = vector.shape_cast %0 : vector<1x8x32xf32> to vector<8x32xf32>
    %c0_2 = arith.constant 0 : index
    %c0_3 = arith.constant 0 : index
    %c0_4 = arith.constant 0 : index
    %2 = vector.load %arg3[%c0_2, %c0_3, %c0_4] : memref<1x8x1xi32, #tpu.memory_space<vmem>>, vector<1x8x1xi32>
    %3 = vector.shape_cast %2 : vector<1x8x1xi32> to vector<8x1xi32>
    %4 = tpu.iota {dimensions = array<i32: 1>} : vector<8x32xi32>
    %5 = arith.truncf %1 : vector<8x32xf32> to vector<8x32xbf16>
    %6 = vector.broadcast %3 : vector<8x1xi32> to vector<8x32xi32>
    %7 = arith.cmpi slt, %4, %6 : vector<8x32xi32>
    %cst = arith.constant 0.000000e+00 : bf16
    %8 = vector.broadcast %cst : bf16 to vector<8x32xbf16>
    %9 = arith.select %7, %5, %8 : vector<8x32xi1>, vector<8x32xbf16>
    %c0_5 = arith.constant 0 : index
    %c0_6 = arith.constant 0 : index
    %10 = vector.load %arg4[%c0_5, %c0_6] : memref<32x96xbf16, #tpu.memory_space<vmem>>, vector<32x96xbf16>
    %cst_7 = arith.constant dense<0.000000e+00> : vector<8x96xf32>
    %11 = tpu.matmul %9, %10, %cst_7 {dimension_numbers = #tpu.dot_dimension_numbers<[1], [0], [0], [1], [0, 0, 1, 1], [], []>} : vector<8x32xbf16>, vector<32x96xbf16>, vector<8x96xf32> -> vector<8x96xf32>
    %12 = arith.truncf %11 : vector<8x96xf32> to vector<8x96xbf16>
    %13 = vector.extract_strided_slice %12 {offsets = [0, 0], sizes = [8, 32], strides = [1, 1]} : vector<8x96xbf16> to vector<8x32xbf16>
    %c0_8 = arith.constant 0 : index
    %c0_9 = arith.constant 0 : index
    %c0_10 = arith.constant 0 : index
    %14 = vector.load %arg5[%c0_8, %c0_9, %c0_10] : memref<1x8x32xbf16, #tpu.memory_space<vmem>>, vector<1x8x32xbf16>
    %15 = vector.shape_cast %14 : vector<1x8x32xbf16> to vector<8x32xbf16>
    %16 = vector.shape_cast %13 : vector<8x32xbf16> to vector<1x8x32xbf16>
    tpu.vector_store %arg5[%c0_8, %c0_9, %c0_10], %16 {strides = array<i32>} : memref<1x8x32xbf16, #tpu.memory_space<vmem>>, vector<1x8x32xbf16>,
    %17 = vector.extract_strided_slice %12 {offsets = [0, 32], sizes = [8, 32], strides = [1, 1]} : vector<8x96xbf16> to vector<8x32xbf16>
    %c0_11 = arith.constant 0 : index
    %c0_12 = arith.constant 0 : index
    %c0_13 = arith.constant 0 : index
    %18 = vector.load %arg6[%c0_11, %c0_12, %c0_13] : memref<1x8x32xbf16, #tpu.memory_space<vmem>>, vector<1x8x32xbf16>
    %19 = vector.shape_cast %18 : vector<1x8x32xbf16> to vector<8x32xbf16>
    %20 = vector.shape_cast %17 : vector<8x32xbf16> to vector<1x8x32xbf16>
    tpu.vector_store %arg6[%c0_11, %c0_12, %c0_13], %20 {strides = array<i32>} : memref<1x8x32xbf16, #tpu.memory_space<vmem>>, vector<1x8x32xbf16>,
    %21 = vector.extract_strided_slice %12 {offsets = [0, 64], sizes = [8, 32], strides = [1, 1]} : vector<8x96xbf16> to vector<8x32xbf16>
    %c0_14 = arith.constant 0 : index
    %c0_15 = arith.constant 0 : index
    %c0_16 = arith.constant 0 : index
    %22 = vector.load %arg7[%c0_14, %c0_15, %c0_16] : memref<1x8x32xbf16, #tpu.memory_space<vmem>>, vector<1x8x32xbf16>
    %23 = vector.shape_cast %22 : vector<1x8x32xbf16> to vector<8x32xbf16>
    %24 = vector.shape_cast %21 : vector<8x32xbf16> to vector<1x8x32xbf16>
    tpu.vector_store %arg7[%c0_14, %c0_15, %c0_16], %24 {strides = array<i32>} : memref<1x8x32xbf16, #tpu.memory_space<vmem>>, vector<1x8x32xbf16>,
    return
  }
  func.func @transform_0(%arg0: i32, %arg1: i32) -> (i32, i32, i32) {
    %c0_i32 = arith.constant 0 : i32
    %c0_i32_0 = arith.constant 0 : i32
    return %arg0, %arg1, %c0_i32 : i32, i32, i32
  }
  func.func @transform_1(%arg0: i32, %arg1: i32) -> (i32, i32, i32) {
    %c0_i32 = arith.constant 0 : i32
    %c0_i32_0 = arith.constant 0 : i32
    return %arg0, %arg1, %c0_i32 : i32, i32, i32
  }
  func.func @transform_2(%arg0: i32, %arg1: i32) -> (i32, i32) {
    %c0_i32 = arith.constant 0 : i32
    %c0_i32_0 = arith.constant 0 : i32
    %c0_i32_1 = arith.constant 0 : i32
    return %c0_i32, %c0_i32_0 : i32, i32
  }
  func.func @transform_3(%arg0: i32, %arg1: i32) -> (i32, i32, i32) {
    %c0_i32 = arith.constant 0 : i32
    %c0_i32_0 = arith.constant 0 : i32
    return %arg0, %arg1, %c0_i32 : i32, i32, i32
  }
  func.func @transform_4(%arg0: i32, %arg1: i32) -> (i32, i32, i32) {
    %c0_i32 = arith.constant 0 : i32
    %c0_i32_0 = arith.constant 0 : i32
    return %arg0, %arg1, %c0_i32 : i32, i32, i32
  }
  func.func @transform_5(%arg0: i32, %arg1: i32) -> (i32, i32, i32) {
    %c0_i32 = arith.constant 0 : i32
    %c0_i32_0 = arith.constant 0 : i32
    return %arg0, %arg1, %c0_i32 : i32, i32, i32
  }
}

</mosaic_0001>

<llo_original>
// kernel: tpu_custom_call.1
$region0: #{tpu_custom_call.1}
  #allocation0 [shape = 'u32[]', space=smem, size = 0x4, offset = 0x4, fixed_abs, tag = 'smem constant byte address 0x4 - core index']
  #allocation1 [shape = 'u32[144,128]{1,0:T(1,128)}', space=vmem, size = 0x12000, scoped, tag = 'internal scratch']
  %s0 = inlined_call_operand.vmem [shape: f32[2,8,32], index: 0, kind: input, shape index: {}]
  %s1 = inlined_call_operand.vmem [shape: s32[2,8,1], index: 1, kind: input, shape index: {}]
  %s2 = inlined_call_operand.hbm [shape: bf16[32,96], index: 2, kind: input, shape index: {}]
  %s3 = inlined_call_operand.hbm [shape: bf16[2,8,32], index: 3, kind: output, shape index: {0}]
  %s4 = inlined_call_operand.hbm [shape: bf16[2,8,32], index: 4, kind: output, shape index: {1}]
  %s5 = inlined_call_operand.hbm [shape: bf16[2,8,32], index: 5, kind: output, shape index: {2}]
  %6 = xla_tuple %s3, %s4, %s5
  %s7 = sld [smem:[#allocation0]]
  $region65: #{tpu_custom_call.1} parent=0
    _
  %s9 = ssub.s32 1, %s7
  %s10 = scalar_select 0, %s9, %s7
  $region1: #{tpu_custom_call.1} parent=0
    #allocation2 [shape = 'u8[8192]{0}', space=vmem, size = 0x2000, scoped, tag = 'input window, operand 2, single buffered']
    #allocation3 [shape = 's32[2]{0}', space=sflag, size = 0x8, scoped, tag = 'scoped memory for tpu_custom_call.1']
    #allocation4 [shape = 's32[2]{0}', space=sflag, size = 0x8, scoped, tag = 'scoped memory for tpu_custom_call.1']
    #allocation5 [shape = 'u8[4096]{0}', space=vmem, size = 0x1000, scoped, tag = 'output window, operand 0']
    #allocation6 [shape = 'u8[4096]{0}', space=vmem, size = 0x1000, scoped, tag = 'output window, operand 1']
    #allocation7 [shape = 's32[2]{0}', space=sflag, size = 0x8, scoped, tag = 'scoped memory for tpu_custom_call.1']
    #allocation8 [shape = 'u8[4096]{0}', space=vmem, size = 0x1000, scoped, tag = 'output window, operand 2']
    %11 = vsyncpa [#allocation3], 0
    %12 = vsyncpa [#allocation4], 0
    %s13 = scalar_lea.sflag [#allocation4], 1
    %14 = vsyncpa %s13, 0
    %15 = vsyncpa [#allocation7], 0
    %s16 = scalar_lea.sflag [#allocation7], 1
    %17 = vsyncpa %s16, 0
    loop: start=0, step=1, limit=4
    $region2: #{tpu_custom_call.1} parent=1 // loop_pre_header
      _
    $region3: #{tpu_custom_call.1} parent=1 // loop_header
      %s19 = sphi 0, %s23
      %p20 = scmp.ge.s32.totalorder %s19, 4
      %s26 = sphi 0, %s38
      %s27 = sphi 0, %s34
      %s28 = sphi 0, %s26
      %s29 = sphi 0, %s27
      %s30 = sphi 0, %s28
      %s31 = sphi 0, %s29
      %s43 = sphi 0, %s45
      %s46 = sphi 0, %s43
      %s47 = sphi 0, %s46
      %s63 = sphi 0, %s47
      %s71 = sphi 0, %s73
      %s74 = sphi 0, %s71
      %s75 = sphi 0, %s74
      %s91 = sphi 0, %s75
      %s95 = sphi 0, %s95
      %s97 = sphi 0, %s95
      %s98 = sphi 0, %s97
      %s112 = sphi 0, %s98
      %s120 = sphi 0, %s122
      %s123 = sphi 0, %s120
      %s124 = sphi 0, %s123
      %s140 = sphi 0, %s124
      %s148 = sphi 0, %s150
      %s151 = sphi 0, %s148
      %s152 = sphi 0, %s151
      %s168 = sphi 0, %s152
      %s176 = sphi 0, %s178
      %s179 = sphi 0, %s176
      %s180 = sphi 0, %s179
      %s196 = sphi 0, %s180
    $region4: #{tpu_custom_call.1} parent=1 // loop_header_branch
      %22 = sbr.rel (%p20) target = $region8
    $region5: #{tpu_custom_call.1} parent=1 // loop_body
      %s24 = ssub.s32 %s19, 1
      %s25 = ssub.s32 %s19, 2
      %s32 = sadd.s32 1, %s27
      %p33 = scmp.ge.s32.totalorder %s32, 1
      %s34 = scalar_select %p33, 0, %s32
      %s35 = sadd.s32 1, %s26
      %s36 = scalar_select %p33, %s35, %s26
      %p37 = scmp.ge.s32.totalorder %s36, 2
      %s38 = scalar_select %p37, 0, %s36
      %s39 = ssub.s32 %s26, %s38
      %s40 = ssub.s32 %s27, %s34
      %s41 = sor.u32 %s39, %s40
      %p42 = scmp.eq.s32.totalorder %s41, 0
      %s44 = sadd.s32 %s43, 1
      %s45 = scalar_select %p42, %s43, %s44
      %p48 = pneg %p42
      %p49 = scmp.eq.s32.totalorder %s19, 1
      %p50 = por %p48, %p49
      %p51 = scmp.ne.s32.totalorder %s43, %s46
      %p52 = scmp.eq.s32.totalorder %s19, 0
      %p53 = por %p51, %p52
      %p54 = scmp.ne.s32.totalorder %s43, %s46
      %p55 = scmp.eq.s32.totalorder %s24, 1
      %p56 = por %p54, %p55
      %p57 = scmp.ne.s32.totalorder %s46, %s47
      %p58 = scmp.eq.s32.totalorder %s24, 0
      %p59 = por %p57, %p58
      %p60 = scmp.ne.s32.totalorder %s46, %s47
      %p61 = scmp.eq.s32.totalorder %s25, 1
      %p62 = por %p60, %p61
      %p64 = scmp.ne.s32.totalorder %s47, %s63
      %p65 = scmp.eq.s32.totalorder %s25, 0
      %p66 = por %p64, %p65
      %s67 = ssub.s32 %s26, %s38
      %s68 = ssub.s32 %s27, %s34
      %s69 = sor.u32 %s67, %s68
      %p70 = scmp.eq.s32.totalorder %s69, 0
      %s72 = sadd.s32 %s71, 1
      %s73 = scalar_select %p70, %s71, %s72
      %p76 = pneg %p70
      %p77 = scmp.eq.s32.totalorder %s19, 1
      %p78 = por %p76, %p77
      %p79 = scmp.ne.s32.totalorder %s71, %s74
      %p80 = scmp.eq.s32.totalorder %s19, 0
      %p81 = por %p79, %p80
      %p82 = scmp.ne.s32.totalorder %s71, %s74
      %p83 = scmp.eq.s32.totalorder %s24, 1
      %p84 = por %p82, %p83
      %p85 = scmp.ne.s32.totalorder %s74, %s75
      %p86 = scmp.eq.s32.totalorder %s24, 0
      %p87 = por %p85, %p86
      %p88 = scmp.ne.s32.totalorder %s74, %s75
      %p89 = scmp.eq.s32.totalorder %s25, 1
      %p90 = por %p88, %p89
      %p92 = scmp.ne.s32.totalorder %s75, %s91
      %p93 = scmp.eq.s32.totalorder %s25, 0
      %p94 = por %p92, %p93
      %s96 = sadd.s32 %s95, 1
      %p99 = scmp.eq.s32.totalorder %s19, 1
      %p100 = scmp.ne.s32.totalorder %s95, %s97
      %p101 = scmp.eq.s32.totalorder %s19, 0
      %p102 = por %p100, %p101
      %p103 = scmp.ne.s32.totalorder %s95, %s97
      %p104 = scmp.eq.s32.totalorder %s24, 1
      %p105 = por %p103, %p104
      %p106 = scmp.ne.s32.totalorder %s97, %s98
      %p107 = scmp.eq.s32.totalorder %s24, 0
      %p108 = por %p106, %p107
      %p109 = scmp.ne.s32.totalorder %s97, %s98
      %p110 = scmp.eq.s32.totalorder %s25, 1
      %p111 = por %p109, %p110
      %p113 = scmp.ne.s32.totalorder %s98, %s112
      %p114 = scmp.eq.s32.totalorder %s25, 0
      %p115 = por %p113, %p114
      %s116 = ssub.s32 %s26, %s38
      %s117 = ssub.s32 %s27, %s34
      %s118 = sor.u32 %s116, %s117
      %p119 = scmp.eq.s32.totalorder %s118, 0
      %s121 = sadd.s32 %s120, 1
      %s122 = scalar_select %p119, %s120, %s121
      %p125 = pneg %p119
      %p126 = scmp.eq.s32.totalorder %s19, 1
      %p127 = por %p125, %p126
      %p128 = scmp.ne.s32.totalorder %s120, %s123
      %p129 = scmp.eq.s32.totalorder %s19, 0
      %p130 = por %p128, %p129
      %p131 = scmp.ne.s32.totalorder %s120, %s123
      %p132 = scmp.eq.s32.totalorder %s24, 1
      %p133 = por %p131, %p132
      %p134 = scmp.ne.s32.totalorder %s123, %s124
      %p135 = scmp.eq.s32.totalorder %s24, 0
      %p136 = por %p134, %p135
      %p137 = scmp.ne.s32.totalorder %s123, %s124
      %p138 = scmp.eq.s32.totalorder %s25, 1
      %p139 = por %p137, %p138
      %p141 = scmp.ne.s32.totalorder %s124, %s140
      %p142 = scmp.eq.s32.totalorder %s25, 0
      %p143 = por %p141, %p142
      %s144 = ssub.s32 %s26, %s38
      %s145 = ssub.s32 %s27, %s34
      %s146 = sor.u32 %s144, %s145
      %p147 = scmp.eq.s32.totalorder %s146, 0
      %s149 = sadd.s32 %s148, 1
      %s150 = scalar_select %p147, %s148, %s149
      %p153 = pneg %p147
      %p154 = scmp.eq.s32.totalorder %s19, 1
      %p155 = por %p153, %p154
      %p156 = scmp.ne.s32.totalorder %s148, %s151
      %p157 = scmp.eq.s32.totalorder %s19, 0
      %p158 = por %p156, %p157
      %p159 = scmp.ne.s32.totalorder %s148, %s151
      %p160 = scmp.eq.s32.totalorder %s24, 1
      %p161 = por %p159, %p160
      %p162 = scmp.ne.s32.totalorder %s151, %s152
      %p163 = scmp.eq.s32.totalorder %s24, 0
      %p164 = por %p162, %p163
      %p165 = scmp.ne.s32.totalorder %s151, %s152
      %p166 = scmp.eq.s32.totalorder %s25, 1
      %p167 = por %p165, %p166
      %p169 = scmp.ne.s32.totalorder %s152, %s168
      %p170 = scmp.eq.s32.totalorder %s25, 0
      %p171 = por %p169, %p170
      %s172 = ssub.s32 %s26, %s38
      %s173 = ssub.s32 %s27, %s34
      %s174 = sor.u32 %s172, %s173
      %p175 = scmp.eq.s32.totalorder %s174, 0
      %s177 = sadd.s32 %s176, 1
      %s178 = scalar_select %p175, %s176, %s177
      %p181 = pneg %p175
      %p182 = scmp.eq.s32.totalorder %s19, 1
      %p183 = por %p181, %p182
      %p184 = scmp.ne.s32.totalorder %s176, %s179
      %p185 = scmp.eq.s32.totalorder %s19, 0
      %p186 = por %p184, %p185
      %p187 = scmp.ne.s32.totalorder %s176, %s179
      %p188 = scmp.eq.s32.totalorder %s24, 1
      %p189 = por %p187, %p188
      %p190 = scmp.ne.s32.totalorder %s179, %s180
      %p191 = scmp.eq.s32.totalorder %s24, 0
      %p192 = por %p190, %p191
      %p193 = scmp.ne.s32.totalorder %s179, %s180
      %p194 = scmp.eq.s32.totalorder %s25, 1
      %p195 = por %p193, %p194
      %p197 = scmp.ne.s32.totalorder %s180, %s196
      %p198 = scmp.eq.s32.totalorder %s25, 0
      %p199 = por %p197, %p198
      %p200 = scmp.le.s32.totalorder 1, %s19
      %p201 = scmp.lt.s32.totalorder %s19, 3
      %p202 = pnand %p200, %p201
      %p203 = pneg %p202
      // Predicated region
      $region9: #{tpu_custom_call.1} parent=5 // pred_check
        _
      $region10: #{tpu_custom_call.1} parent=5 // pred_check_branch
        %205 = sbr.rel (%p202) target = $region12
      $region11: #{tpu_custom_call.1} parent=5 // pred_region
        %s206 = ssub.s32 %s19, 1
        // Predicated region
        $region13: #{tpu_custom_call.1} parent=11 // pred_check
          %p207 = pneg %p108
        $region14: #{tpu_custom_call.1} parent=11 // pred_check_branch
          %209 = sbr.rel (%p207) target = $region16
        $region15: #{tpu_custom_call.1} parent=11 // pred_region
          %s211 = ssub.s32 256, 256
          %212 = vsyncadd [#allocation3], %s211
          %s213 = sshll.u32 [#allocation2], 4
          %s214 = int_to_ptr.vmem [resolvable:$true] %s213
          %219 = dma.hbm_to_vmem [thread:$0]  %s2, 256, %s214, [#allocation3], 64, 64, 4
        $region16: #{tpu_custom_call.1} parent=11 // pred_fallthru
          _
      $region12: #{tpu_custom_call.1} parent=5 // pred_fallthru
        _
      %p220 = scmp.lt.s32.totalorder %s19, 2
      // Predicated region
      $region17: #{tpu_custom_call.1} parent=5 // pred_check
        %p221 = pneg %p220
      $region18: #{tpu_custom_call.1} parent=5 // pred_check_branch
        %223 = sbr.rel (%p221) target = $region20
      $region19: #{tpu_custom_call.1} parent=5 // pred_region
        // Predicated region
        $region21: #{tpu_custom_call.1} parent=19 // pred_check
          %p224 = pneg %p53
        $region22: #{tpu_custom_call.1} parent=19 // pred_check_branch
          %226 = sbr.rel (%p224) target = $region24
        $region23: #{tpu_custom_call.1} parent=19 // pred_region
          %p227 = scmp.lt.s32.totalorder %s26, 1
          %s228 = scalar_select %p227, %s26, 1
          %p229 = scmp.lt.s32.totalorder %s27, 0
          %s230 = scalar_select %p229, %s27, 0
          %s231 = sadd.s32 %s230, %s228
          %s232 = smul.addr %s231, 8
          %s233 = scalar_lea.vmem %s0, %s232
        $region24: #{tpu_custom_call.1} parent=19 // pred_fallthru
          _
        // Predicated region
        $region25: #{tpu_custom_call.1} parent=19 // pred_check
          %p234 = pneg %p81
        $region26: #{tpu_custom_call.1} parent=19 // pred_check_branch
          %236 = sbr.rel (%p234) target = $region28
        $region27: #{tpu_custom_call.1} parent=19 // pred_region
          %p237 = scmp.lt.s32.totalorder %s26, 1
          %s238 = scalar_select %p237, %s26, 1
          %p239 = scmp.lt.s32.totalorder %s27, 0
          %s240 = scalar_select %p239, %s27, 0
          %s241 = sadd.s32 %s240, %s238
          %s242 = smul.addr %s241, 8
          %s243 = scalar_lea.vmem %s1, %s242
        $region28: #{tpu_custom_call.1} parent=19 // pred_fallthru
          _
      $region20: #{tpu_custom_call.1} parent=5 // pred_fallthru
        _
      %p244 = scmp.le.s32.totalorder 1, %s19
      %p245 = scmp.lt.s32.totalorder %s19, 3
      %p246 = pnand %p244, %p245
      %p247 = pneg %p246
      // Predicated region
      $region29: #{tpu_custom_call.1} parent=5 // pred_check
        _
      $region30: #{tpu_custom_call.1} parent=5 // pred_check_branch
        %249 = sbr.rel (%p246) target = $region32
      $region31: #{tpu_custom_call.1} parent=5 // pred_region
        %s250 = ssub.s32 %s19, 1
        // Predicated region
        $region33: #{tpu_custom_call.1} parent=31 // pred_check
          %p251 = pneg %p108
        $region34: #{tpu_custom_call.1} parent=31 // pred_check_branch
          %253 = sbr.rel (%p251) target = $region36
        $region35: #{tpu_custom_call.1} parent=31 // pred_region
          %254 = dma.done [#allocation3], 256
        $region36: #{tpu_custom_call.1} parent=31 // pred_fallthru
          _
        %p255 = scmp.lt.s32.totalorder %s28, 1
        %s256 = scalar_select %p255, %s28, 1
        %p257 = scmp.lt.s32.totalorder %s29, 0
        %s258 = scalar_select %p257, %s29, 0
        %s259 = sadd.s32 %s258, %s256
        %s260 = smul.addr %s259, 8
        %s261 = scalar_lea.vmem %s0, %s260
        %p262 = pneg %p59
        %p263 = pneg %p56
        %p264 = scmp.lt.s32.totalorder %s28, 1
        %s265 = scalar_select %p264, %s28, 1
        %p266 = scmp.lt.s32.totalorder %s29, 0
        %s267 = scalar_select %p266, %s29, 0
        %s268 = sadd.s32 %s267, %s265
        %s269 = smul.addr %s268, 8
        %s270 = scalar_lea.vmem %s1, %s269
        %p271 = pneg %p87
        %p272 = pneg %p84
        %p273 = pneg %p108
        %p274 = pneg %p105
        %p275 = pneg %p136
        %p276 = pneg %p133
        %s277 = sand.u32 %s123, 1
        %s278 = scalar_lea.sflag [#allocation4], %s277
        %s279 = sand.u32 %s123, 1
        %s280 = smul.addr %s279, 4
        %s281 = scalar_lea.vmem [#allocation5], %s280
        %p282 = pneg %p164
        %p283 = pneg %p161
        %s284 = sand.u32 %s24, 1
        %s285 = scalar_lea.sflag [#allocation7], %s284
        %s286 = sand.u32 %s151, 1
        %s287 = smul.addr %s286, 4
        %s288 = scalar_lea.vmem [#allocation6], %s287
        %p289 = pneg %p192
        %p290 = pneg %p189
        %s291 = sand.u32 %s24, 1
        %s292 = scalar_lea.sflag [#allocation7], %s291
        %s293 = sand.u32 %s179, 1
        %s294 = smul.addr %s293, 4
        %s295 = scalar_lea.vmem [#allocation8], %s294
        %p296 = scmp.lt.s32.totalorder %s28, 1
        %s297 = scalar_select %p296, %s28, 1
        %p298 = scmp.lt.s32.totalorder %s29, 0
        %s299 = scalar_select %p298, %s29, 0
        %s300 = sadd.s32 %s299, %s297
        %s301 = smul.addr %s300, 8
        %s302 = scalar_lea.vmem %s0, %s301
        %p303 = scmp.lt.s32.totalorder %s28, 1
        %s304 = scalar_select %p303, %s28, 1
        %p305 = scmp.lt.s32.totalorder %s29, 0
        %s306 = scalar_select %p305, %s29, 0
        %s307 = sadd.s32 %s306, %s304
        %s308 = smul.addr %s307, 8
        %s309 = scalar_lea.vmem %s1, %s308
        %v311 = vld [vmem:[%s302] sm:$0xff]
        %v312 = vld [vmem:[%s309] sm:$0xff]
        %v313 = vlaneseq
        %v314 = vand.u32 %v313, 127
        %v315 = vpack.c.bf16 %v311, %v311
        %316 = vset.pattern.permute.xlu0 0
        %317 = vperm.xlu0 %316, %v312
        %v318 = vpop.permute.xlu0 %317
        %vm319 = vcmp.lt.s32.totalorder %v314, %v318
        %vm320 = vmpackc.low %vm319, %vm319
        %v321 = vsel %vm320, %v315, 0
        %v322 = vld [vmem:[#allocation2] sm:$0xf]
        %v323 = vld [vmem:[#allocation2 + $0x4] sm:$0xf]
        %v324 = vld [vmem:[#allocation2 + $0x8] sm:$0xf]
        %v325 = vld [vmem:[#allocation2 + $0xc] sm:$0xf]
        %v330 = vunpack.c.l.b16 %v322
        %v331 = vunpack.c.l.b16 %v323
        %v332 = vunpack.c.l.b16 %v324
        %v333 = vunpack.c.l.b16 %v325
        %v334 = vpack.c.b16 %v331, %v330
        %v335 = vpack.c.b16 %v333, %v332
        %vm338 = vcmask 261120
        %v340 = vsel %vm338, %v321, 0
        %342 = vmatprep.subr.bf16.mxu0 0
        %343 = vmatpush1.bf16.msra.mxu0 %v334
        %344 = vmatprep.subr.bf16.mxu0 0
        %345 = vmatpush1.bf16.msra.mxu0 %v335
        %346 = vmatprep.subr.bf16.mxu0 0
        %347 = vmatpush1.bf16.msra.mxu0 0
        %348 = vmatprep.subr.bf16.mxu0 0
        %349 = vmatpush1.bf16.msra.mxu0 0
        %350 = vmatprep.subr.bf16.mxu0 0
        %351 = vmatpush1.bf16.msra.mxu0 0
        %352 = vmatprep.subr.bf16.mxu0 0
        %353 = vmatpush1.bf16.msra.mxu0 0
        %354 = vmatprep.subr.bf16.mxu0 0
        %355 = vmatpush1.bf16.msra.mxu0 0
        %356 = vmatprep.subr.bf16.mxu0 0
        %357 = vmatpush1.bf16.msra.mxu0 0
        %358 = vmatprep.subr.bf16.mxu0 0
        %359 = vmatpush1.bf16.msra.mxu0 0
        %360 = vmatprep.subr.bf16.mxu0 0
        %361 = vmatpush1.bf16.msra.mxu0 0
        %362 = vmatprep.subr.bf16.mxu0 0
        %363 = vmatpush1.bf16.msra.mxu0 0
        %364 = vmatprep.subr.bf16.mxu0 0
        %365 = vmatpush1.bf16.msra.mxu0 0
        %366 = vmatprep.subr.bf16.mxu0 0
        %367 = vmatpush1.bf16.msra.mxu0 0
        %368 = vmatprep.subr.bf16.mxu0 0
        %369 = vmatpush1.bf16.msra.mxu0 0
        %370 = vmatprep.subr.bf16.mxu0 0
        %371 = vmatpush1.bf16.msra.mxu0 0
        %372 = vmatprep.subr.bf16.mxu0 0
        %373 = vmatpush1.bf16.msra.mxu0 0
        %374 = vmatprep.mubr.bf16.mxu0 0
        %375 = vmatmul.mubr.bf16.gmra.mrb[0].mxu0 %v340
        %v376 = vpop.f32.mrb[0].mxu0
        %v377 = vadd.f32 0.0, %v376
        %v378 = vpop.f32.mrb[0].mxu0
        %v379 = vpop.f32.mrb[0].mxu0
        %v380 = vpop.f32.mrb[0].mxu0
        %381 = vdwg.mxu0
        %v382 = vpack.c.bf16 %v377, %v377
        %vm383 = vcmask 257024
        %384 = vst.msk [vmem:[%s281] sm:$0xf] %vm383, %v382
        %v386 = vunpack.c.l.b16 %v382
        %v387 = vpack.c.b16 %v386, %v386
        %388 = vrot.lane.b32.xlu0 %v387, 96
        %v389 = vpop.permute.xlu0 %388
        %391 = vst.msk [vmem:[%s288] sm:$0xf] %vm383, %v389
        %392 = vrot.lane.b32.xlu0 %v387, 64
        %v393 = vpop.permute.xlu0 %392
        %395 = vst.msk [vmem:[%s295] sm:$0xf] %vm383, %v393
        %s396 = sand.u32 %s123, 1
        %s397 = scalar_lea.sflag [#allocation4], %s396
        %s398 = sand.u32 %s123, 1
        %s399 = smul.addr %s398, 4
        %s400 = scalar_lea.vmem [#allocation5], %s399
        %s401 = sand.u32 %s24, 1
        %s402 = scalar_lea.sflag [#allocation7], %s401
        %s403 = sand.u32 %s151, 1
        %s404 = smul.addr %s403, 4
        %s405 = scalar_lea.vmem [#allocation6], %s404
        %s406 = sand.u32 %s24, 1
        %s407 = scalar_lea.sflag [#allocation7], %s406
        %s408 = sand.u32 %s179, 1
        %s409 = smul.addr %s408, 4
        %s410 = scalar_lea.vmem [#allocation8], %s409
        // Predicated region
        $region37: #{tpu_custom_call.1} parent=31 // pred_check
          %p411 = pneg %p133
        $region38: #{tpu_custom_call.1} parent=31 // pred_check_branch
          %413 = sbr.rel (%p411) target = $region40
        $region39: #{tpu_custom_call.1} parent=31 // pred_region
          %s415 = ssub.s32 64, 64
          %416 = vsyncadd %s397, %s415
          %s417 = sadd.s32 %s29, %s28
          %s418 = smul.addr %s417, 64
          %s419 = scalar_lea.hbm %s3, %s418
          %s421 = sshll.u32 %s400, 4
          %s422 = int_to_ptr.vmem [resolvable:$true] %s421
          %424 = dma.vmem_to_hbm [thread:$0]  %s422, 64, %s419, %s397
        $region40: #{tpu_custom_call.1} parent=31 // pred_fallthru
          _
        // Predicated region
        $region41: #{tpu_custom_call.1} parent=31 // pred_check
          %p425 = pneg %p161
        $region42: #{tpu_custom_call.1} parent=31 // pred_check_branch
          %427 = sbr.rel (%p425) target = $region44
        $region43: #{tpu_custom_call.1} parent=31 // pred_region
          %s429 = ssub.s32 64, 64
          %430 = vsyncadd %s402, %s429
          %s431 = sadd.s32 %s29, %s28
          %s432 = smul.addr %s431, 64
          %s433 = scalar_lea.hbm %s4, %s432
          %s435 = sshll.u32 %s405, 4
          %s436 = int_to_ptr.vmem [resolvable:$true] %s435
          %438 = dma.vmem_to_hbm [thread:$0]  %s436, 64, %s433, %s402
        $region44: #{tpu_custom_call.1} parent=31 // pred_fallthru
          _
        // Predicated region
        $region45: #{tpu_custom_call.1} parent=31 // pred_check
          %p439 = pneg %p189
        $region46: #{tpu_custom_call.1} parent=31 // pred_check_branch
          %441 = sbr.rel (%p439) target = $region48
        $region47: #{tpu_custom_call.1} parent=31 // pred_region
          %s443 = ssub.s32 64, 64
          %444 = vsyncadd %s407, %s443
          %s445 = sadd.s32 %s29, %s28
          %s446 = smul.addr %s445, 64
          %s447 = scalar_lea.hbm %s5, %s446
          %s449 = sshll.u32 %s410, 4
          %s450 = int_to_ptr.vmem [resolvable:$true] %s449
          %452 = dma.vmem_to_hbm [thread:$0]  %s450, 64, %s447, %s407
        $region48: #{tpu_custom_call.1} parent=31 // pred_fallthru
          _
      $region32: #{tpu_custom_call.1} parent=5 // pred_fallthru
        _
      %p453 = scmp.le.s32.totalorder 2, %s19
      // Predicated region
      $region49: #{tpu_custom_call.1} parent=5 // pred_check
        %p454 = pneg %p453
      $region50: #{tpu_custom_call.1} parent=5 // pred_check_branch
        %456 = sbr.rel (%p454) target = $region52
      $region51: #{tpu_custom_call.1} parent=5 // pred_region
        %s457 = ssub.s32 %s19, 2
        // Predicated region
        $region53: #{tpu_custom_call.1} parent=51 // pred_check
          %p458 = pneg %p139
        $region54: #{tpu_custom_call.1} parent=51 // pred_check_branch
          %460 = sbr.rel (%p458) target = $region56
        $region55: #{tpu_custom_call.1} parent=51 // pred_region
          %s461 = sand.u32 %s124, 1
          %s462 = scalar_lea.sflag [#allocation4], %s461
          %s463 = sand.u32 %s124, 1
          %s464 = smul.addr %s463, 4
          %s465 = scalar_lea.vmem [#allocation5], %s464
          %466 = dma.done %s462, 64
        $region56: #{tpu_custom_call.1} parent=51 // pred_fallthru
          _
        // Predicated region
        $region57: #{tpu_custom_call.1} parent=51 // pred_check
          %p467 = pneg %p167
        $region58: #{tpu_custom_call.1} parent=51 // pred_check_branch
          %469 = sbr.rel (%p467) target = $region60
        $region59: #{tpu_custom_call.1} parent=51 // pred_region
          %s470 = sand.u32 %s25, 1
          %s471 = scalar_lea.sflag [#allocation7], %s470
          %s472 = sand.u32 %s152, 1
          %s473 = smul.addr %s472, 4
          %s474 = scalar_lea.vmem [#allocation6], %s473
          %475 = dma.done %s471, 64
        $region60: #{tpu_custom_call.1} parent=51 // pred_fallthru
          _
        // Predicated region
        $region61: #{tpu_custom_call.1} parent=51 // pred_check
          %p476 = pneg %p195
        $region62: #{tpu_custom_call.1} parent=51 // pred_check_branch
          %478 = sbr.rel (%p476) target = $region64
        $region63: #{tpu_custom_call.1} parent=51 // pred_region
          %s479 = sand.u32 %s25, 1
          %s480 = scalar_lea.sflag [#allocation7], %s479
          %s481 = sand.u32 %s180, 1
          %s482 = smul.addr %s481, 4
          %s483 = scalar_lea.vmem [#allocation8], %s482
          %484 = dma.done %s480, 64
        $region64: #{tpu_custom_call.1} parent=51 // pred_fallthru
          _
      $region52: #{tpu_custom_call.1} parent=5 // pred_fallthru
        _
    $region6: #{tpu_custom_call.1} parent=1 // loop_footer
      %s23 = sadd.s32 1, %s19
    $region7: #{tpu_custom_call.1} parent=1 // loop_footer_branch
      %18 = sbr.rel target = $region3
    $region8: #{tpu_custom_call.1} parent=1 // loop_exit
      _
    %485 = vsyncpa [#allocation3], 1
    %s486 = scalar_lea.sflag [#allocation3], 1
    %487 = vsyncpa %s486, 1
    %488 = vsyncpa [#allocation4], 1
    %s489 = scalar_lea.sflag [#allocation4], 1
    %490 = vsyncpa %s489, 1
    %491 = vsyncpa [#allocation7], 1
    %s492 = scalar_lea.sflag [#allocation7], 1
    %493 = vsyncpa %s492, 1

</llo_original>
